<compile_context>
chip_gen: v5e
topology: v5e:2x2
jax: 0.10.0
libtpu: 0.0.40
codegen_flags: <defaults>
</compile_context>

<pallas_src>
import math
import jax
import jax.numpy as jnp
from jax.experimental import pallas as pl
from jax.experimental.pallas import tpu as pltpu


def _round_up(x, m):
    return (x + m - 1) // m * m


# ---------------------------------------------------------------------------
# Kernels
# ---------------------------------------------------------------------------
def ffn_kernel_single(x_ref, w1_ref, b1_ref, w2_ref, b2_ref, o_ref):
    """Fast path: whole hidden dim resident.  grid = (M tiles,)."""
    # x_ref: (tm, E) bf16   w1_ref: (E, H) bf16   b1_ref: (1, H) f32
    # w2_ref: (H, E) bf16   b2_ref: (1, E) f32    o_ref: (tm, E) f32
    h = jnp.dot(x_ref[...], w1_ref[...], preferred_element_type=jnp.float32)
    h = h + b1_ref[...]
    h = jax.nn.gelu(h, approximate=True)          # tanh GELU -> EUP
    out = jnp.dot(h.astype(w2_ref.dtype), w2_ref[...],
                  preferred_element_type=jnp.float32)
    o_ref[...] = (out + b2_ref[...]).astype(o_ref.dtype)


def ffn_kernel_tiled(x_ref, w1_ref, b1_ref, w2_ref, b2_ref, o_ref, acc_ref):
    """Tiled path: hidden dim split across trailing reduction axis j."""
    # x_ref:  (tm, E) bf16    w1_ref: (E, th) bf16    b1_ref: (1, th) f32
    # w2_ref: (th, E) bf16    b2_ref: (1, E)  f32
    # o_ref:  (tm, E) f32     acc_ref: (tm, E) f32 scratch (resident across j)
    j = pl.program_id(1)

    @pl.when(j == 0)
    def _():
        # Fold the second bias into the accumulator init (one broadcast per M tile).
        acc_ref[...] = jnp.broadcast_to(b2_ref[...], acc_ref.shape)

    # First linear: bf16 operands, f32 accumulation on the MXU; bias add in f32.
    h = jnp.dot(x_ref[...], w1_ref[...], preferred_element_type=jnp.float32)
    h = h + b1_ref[...]

    # tanh-approx GELU (EUP-friendly).  ~1e-3 abs deviation from exact erf GELU.
    h = jax.nn.gelu(h, approximate=True)

    # Second linear: accumulate this H-slice's contribution into the f32 scratch.
    acc_ref[...] += jnp.dot(h.astype(w2_ref.dtype), w2_ref[...],
                            preferred_element_type=jnp.float32)

    @pl.when(j == pl.num_programs(1) - 1)
    def _():
        o_ref[...] = acc_ref[...].astype(o_ref.dtype)


# ---------------------------------------------------------------------------
# Wrapper
# ---------------------------------------------------------------------------
def feed_forward(x, w1, b1, w2, b2, *, tile_m=512, tile_h=512,
                 compute_dtype=jnp.bfloat16):
    """x: (B, S, E). Weights stored [in, out] (transpose of PyTorch). Returns (B, S, E)."""
    B, S, E = x.shape
    H = w1.shape[1]
    M = B * S

    # --- tile sizing --------------------------------------------------------
    # M tile: as large as requested, capped at the padded token count; multiple of
    # 16 so bf16 sublane packing is clean.
    tm = min(tile_m, _round_up(M, 16))
    m_pad = _round_up(M, tm)
    # H tile: multiple of 128 when splitting H, otherwise keep H fully resident.
    th = tile_h if (tile_h < H and H % tile_h == 0 and tile_h % 128 == 0) else H

    grid_m = m_pad // tm
    grid_h = H // th
    single_pass = (grid_h == 1)

    # --- operand layout -----------------------------------------------------
    x2d = x.reshape(M, E)
    if m_pad != M:
        x2d = jnp.pad(x2d, ((0, m_pad - M), (0, 0)))
    x2d = x2d.astype(compute_dtype)
    w1c = w1.astype(compute_dtype)
    w2c = w2.astype(compute_dtype)
    b1_2d = b1.reshape(1, H).astype(jnp.float32)
    b2_2d = b2.reshape(1, E).astype(jnp.float32)

    # --- VMEM budget: double-buffered ins/outs + f32 accumulator + slack ----
    bpe = jnp.dtype(compute_dtype).itemsize
    est = (2 * (tm * E * bpe + E * th * bpe + th * 4 + th * E * bpe + E * 4
                + tm * E * 4)
           + (0 if single_pass else tm * E * 4)   # scratch accumulator
           + tm * th * 4                           # GELU intermediate
           + (2 << 20))
    vmem_limit = int(min(max(est, 32 << 20), 56 << 20))

    cost = pl.CostEstimate(
        flops=2 * m_pad * (E * H + H * E),
        transcendentals=m_pad * H,
        bytes_accessed=(m_pad * E * bpe + E * H * bpe + H * E * bpe
                        + (H + E) * 4 + m_pad * E * x.dtype.itemsize),
    )

    if single_pass:
        grid_spec = pltpu.PrefetchScalarGridSpec(
            num_scalar_prefetch=0,
            grid=(grid_m,),
            in_specs=[
                pl.BlockSpec((tm, E), lambda i: (i, 0)),     # x tile
                pl.BlockSpec((E, H), lambda i: (0, 0)),      # W1 (resident)
                pl.BlockSpec((1, H), lambda i: (0, 0)),      # b1
                pl.BlockSpec((H, E), lambda i: (0, 0)),      # W2 (resident)
                pl.BlockSpec((1, E), lambda i: (0, 0)),      # b2
            ],
            out_specs=pl.BlockSpec((tm, E), lambda i: (i, 0)),
            scratch_shapes=[],
        )
        kernel = ffn_kernel_single
        dim_sem = ("parallel",)
    else:
        grid_spec = pltpu.PrefetchScalarGridSpec(
            num_scalar_prefetch=0,
            grid=(grid_m, grid_h),                           # H (reduction) last
            in_specs=[
                pl.BlockSpec((tm, E), lambda i, j: (i, 0)),  # x tile
                pl.BlockSpec((E, th), lambda i, j: (0, j)),  # W1 H-slice
                pl.BlockSpec((1, th), lambda i, j: (0, j)),  # b1 H-slice
                pl.BlockSpec((th, E), lambda i, j: (j, 0)),  # W2 H-slice
                pl.BlockSpec((1, E), lambda i, j: (0, 0)),   # b2
            ],
            out_specs=pl.BlockSpec((tm, E), lambda i, j: (i, 0)),
            scratch_shapes=[pltpu.VMEM((tm, E), jnp.float32)],   # f32 accumulator
        )
        kernel = ffn_kernel_tiled
        dim_sem = ("parallel", "arbitrary")

    out2d = pl.pallas_call(
        kernel,
        out_shape=jax.ShapeDtypeStruct((m_pad, E), x.dtype),
        grid_spec=grid_spec,
        compiler_params=pltpu.CompilerParams(
            dimension_semantics=dim_sem,
            vmem_limit_bytes=vmem_limit,
        ),
        cost_estimate=cost,
    )(x2d, w1c, b1_2d, w2c, b2_2d)

    if m_pad != M:
        out2d = out2d[:M]
    return out2d.reshape(B, S, E)


# ---------------------------------------------------------------------------
# Init / reference / test
# ---------------------------------------------------------------------------
def init_params(key, embed_dim, hidden_dim):
    """Deterministic init matching nn.Linear default: U(-1/sqrt(fan_in), 1/sqrt(fan_in))."""
    k1, k2, k3, k4 = jax.random.split(key, 4)
    bound1 = 1.0 / math.sqrt(embed_dim)
    bound2 = 1.0 / math.sqrt(hidden_dim)
    # stored as [in, out] (transpose of PyTorch's [out, in])
    w1 = jax.random.uniform(k1, (embed_dim, hidden_dim), jnp.float32, -bound1, bound1)
    b1 = jax.random.uniform(k2, (hidden_dim,), jnp.float32, -bound1, bound1)
    w2 = jax.random.uniform(k3, (hidden_dim, embed_dim), jnp.float32, -bound2, bound2)
    b2 = jax.random.uniform(k4, (embed_dim,), jnp.float32, -bound2, bound2)
    return w1, b1, w2, b2


def _reference(x, w1, b1, w2, b2):
    """f32, exact erf-GELU reference (PyTorch module semantics, eval mode)."""
    B, S, E = x.shape
    h = x.reshape(-1, E) @ w1 + b1
    h = 0.5 * h * (1.0 + jax.lax.erf(h / math.sqrt(2.0)))
    return (h @ w2 + b2).reshape(B, S, E)


if __name__ == "__main__":
    key = jax.random.PRNGKey(0)
    kx, kp = jax.random.split(key)

    # Small config matching the module (batch=2, seq=8, embed=32, hidden=64).
    batch, seq, embed_dim, hidden_dim = 2, 8, 32, 64
    x = jax.random.normal(kx, (batch, seq, embed_dim), jnp.float32)
    w1, b1, w2, b2 = init_params(kp, embed_dim, hidden_dim)

    out = feed_forward(x, w1, b1, w2, b2)            # fast path (H resident)
    out = jax.block_until_ready(out)

    ref = _reference(x, w1, b1, w2, b2)
    # Kernel uses bf16 MXU operands + tanh GELU -> compare at a loose tolerance.
    assert out.shape == ref.shape
    assert jnp.allclose(out, ref, atol=5e-2, rtol=5e-2), "mismatch vs reference"

    # Second config exercising M padding (M=15 -> 16) and H tiling (th=128 < H=256).
    b2_, s2_, e2_, h2_ = 3, 5, 128, 256
    x2 = jax.random.normal(kx, (b2_, s2_, e2_), jnp.float32)
    w1b, b1b, w2b, b2b = init_params(jax.random.PRNGKey(1), e2_, h2_)
    out2 = jax.block_until_ready(
        feed_forward(x2, w1b, b1b, w2b, b2b, tile_m=16, tile_h=128))  # tiled path
    ref2 = _reference(x2, w1b, b1b, w2b, b2b)
    assert jnp.allclose(out2, ref2, atol=5e-2, rtol=5e-2), "mismatch vs reference (tiled)"

    print("KERNEL_OK")
</pallas_src>

<mosaic_0001>
module attributes {stable_mosaic.version = 11 : i64} {
  func.func @ffn_kernel_single(%arg0: i32, %arg1: memref<16x32xbf16, #tpu.memory_space<vmem>>, %arg2: memref<32x64xbf16, #tpu.memory_space<vmem>>, %arg3: memref<1x64xf32, #tpu.memory_space<vmem>>, %arg4: memref<64x32xbf16, #tpu.memory_space<vmem>>, %arg5: memref<1x32xf32, #tpu.memory_space<vmem>>, %arg6: memref<16x32xf32, #tpu.memory_space<vmem>>) attributes {dimension_semantics = [#tpu.dimension_semantics<parallel>], iteration_bounds = array<i64: 1>, scalar_prefetch = 0 : i64, scratch_operands = 0 : i64, tpu.core_type = #tpu.core_type<tc>, window_params = [{transform_indices = @transform_0, window_bounds = array<i64: 16, 32>}, {pipeline_mode = #tpu.pipeline_mode<synchronous>, transform_indices = @transform_1, window_bounds = array<i64: 32, 64>}, {pipeline_mode = #tpu.pipeline_mode<synchronous>, transform_indices = @transform_2, window_bounds = array<i64: 1, 64>}, {pipeline_mode = #tpu.pipeline_mode<synchronous>, transform_indices = @transform_3, window_bounds = array<i64: 64, 32>}, {pipeline_mode = #tpu.pipeline_mode<synchronous>, transform_indices = @transform_4, window_bounds = array<i64: 1, 32>}, {transform_indices = @transform_5, window_bounds = array<i64: 16, 32>}]} {
    %c0 = arith.constant 0 : index
    %c0_0 = arith.constant 0 : index
    %0 = vector.load %arg1[%c0, %c0_0] : memref<16x32xbf16, #tpu.memory_space<vmem>>, vector<16x32xbf16>
    %c0_1 = arith.constant 0 : index
    %c0_2 = arith.constant 0 : index
    %1 = vector.load %arg2[%c0_1, %c0_2] : memref<32x64xbf16, #tpu.memory_space<vmem>>, vector<32x64xbf16>
    %cst = arith.constant dense<0.000000e+00> : vector<16x64xf32>
    %2 = tpu.matmul %0, %1, %cst {dimension_numbers = #tpu.dot_dimension_numbers<[1], [0], [0], [1], [0, 0, 1, 1], [], []>} : vector<16x32xbf16>, vector<32x64xbf16>, vector<16x64xf32> -> vector<16x64xf32>
    %c0_3 = arith.constant 0 : index
    %c0_4 = arith.constant 0 : index
    %3 = vector.load %arg3[%c0_3, %c0_4] : memref<1x64xf32, #tpu.memory_space<vmem>>, vector<1x64xf32>
    %4 = vector.broadcast %3 : vector<1x64xf32> to vector<16x64xf32>
    %5 = arith.addf %2, %4 : vector<16x64xf32>
    %6 = arith.mulf %5, %5 : vector<16x64xf32>
    %7 = arith.mulf %5, %6 : vector<16x64xf32>
    %cst_5 = arith.constant 4.471500e-02 : f32
    %8 = vector.broadcast %cst_5 : f32 to vector<16x64xf32>
    %9 = arith.mulf %8, %7 : vector<16x64xf32>
    %10 = arith.addf %5, %9 : vector<16x64xf32>
    %cst_6 = arith.constant 0.797884583 : f32
    %11 = vector.broadcast %cst_6 : f32 to vector<16x64xf32>
    %12 = arith.mulf %11, %10 : vector<16x64xf32>
    %13 = math.tanh %12 : vector<16x64xf32>
    %cst_7 = arith.constant 1.000000e+00 : f32
    %14 = vector.broadcast %cst_7 : f32 to vector<16x64xf32>
    %15 = arith.addf %14, %13 : vector<16x64xf32>
    %cst_8 = arith.constant 5.000000e-01 : f32
    %16 = vector.broadcast %cst_8 : f32 to vector<16x64xf32>
    %17 = arith.mulf %16, %15 : vector<16x64xf32>
    %18 = arith.mulf %5, %17 : vector<16x64xf32>
    %19 = arith.truncf %18 : vector<16x64xf32> to vector<16x64xbf16>
    %c0_9 = arith.constant 0 : index
    %c0_10 = arith.constant 0 : index
    %20 = vector.load %arg4[%c0_9, %c0_10] : memref<64x32xbf16, #tpu.memory_space<vmem>>, vector<64x32xbf16>
    %cst_11 = arith.constant dense<0.000000e+00> : vector<16x32xf32>
    %21 = tpu.matmul %19, %20, %cst_11 {dimension_numbers = #tpu.dot_dimension_numbers<[1], [0], [0], [1], [0, 0, 1, 1], [], []>} : vector<16x64xbf16>, vector<64x32xbf16>, vector<16x32xf32> -> vector<16x32xf32>
    %c0_12 = arith.constant 0 : index
    %c0_13 = arith.constant 0 : index
    %22 = vector.load %arg5[%c0_12, %c0_13] : memref<1x32xf32, #tpu.memory_space<vmem>>, vector<1x32xf32>
    %23 = vector.broadcast %22 : vector<1x32xf32> to vector<16x32xf32>
    %24 = arith.addf %21, %23 : vector<16x32xf32>
    %c0_14 = arith.constant 0 : index
    %c0_15 = arith.constant 0 : index
    %25 = vector.load %arg6[%c0_14, %c0_15] : memref<16x32xf32, #tpu.memory_space<vmem>>, vector<16x32xf32>
    tpu.vector_store %arg6[%c0_14, %c0_15], %24 {strides = array<i32>} : memref<16x32xf32, #tpu.memory_space<vmem>>, vector<16x32xf32>,
    return
  }
  func.func @transform_0(%arg0: i32) -> (i32, i32) {
    %c0_i32 = arith.constant 0 : i32
    %c0_i32_0 = arith.constant 0 : i32
    return %arg0, %c0_i32 : i32, i32
  }
  func.func @transform_1(%arg0: i32) -> (i32, i32) {
    %c0_i32 = arith.constant 0 : i32
    %c0_i32_0 = arith.constant 0 : i32
    %c0_i32_1 = arith.constant 0 : i32
    return %c0_i32, %c0_i32_0 : i32, i32
  }
  func.func @transform_2(%arg0: i32) -> (i32, i32) {
    %c0_i32 = arith.constant 0 : i32
    %c0_i32_0 = arith.constant 0 : i32
    %c0_i32_1 = arith.constant 0 : i32
    return %c0_i32, %c0_i32_0 : i32, i32
  }
  func.func @transform_3(%arg0: i32) -> (i32, i32) {
    %c0_i32 = arith.constant 0 : i32
    %c0_i32_0 = arith.constant 0 : i32
    %c0_i32_1 = arith.constant 0 : i32
    return %c0_i32, %c0_i32_0 : i32, i32
  }
  func.func @transform_4(%arg0: i32) -> (i32, i32) {
    %c0_i32 = arith.constant 0 : i32
    %c0_i32_0 = arith.constant 0 : i32
    %c0_i32_1 = arith.constant 0 : i32
    return %c0_i32, %c0_i32_0 : i32, i32
  }
  func.func @transform_5(%arg0: i32) -> (i32, i32) {
    %c0_i32 = arith.constant 0 : i32
    %c0_i32_0 = arith.constant 0 : i32
    return %arg0, %c0_i32 : i32, i32
  }
}

</mosaic_0001>

<llo_original>
// kernel: tpu_custom_call.1
$region0: #{tpu_custom_call.1}
  #allocation0 [shape = 'u32[]', space=smem, size = 0x4, offset = 0x4, fixed_abs, tag = 'smem constant byte address 0x4 - core index']
  #allocation1 [shape = 'u32[72,128]{1,0:T(1,128)}', space=vmem, size = 0x9000, scoped, tag = 'internal scratch']
  %s0 = inlined_call_operand.vmem [shape: bf16[16,32], index: 0, kind: input, shape index: {}]
  %s1 = inlined_call_operand.vmem [shape: bf16[32,64], index: 1, kind: input, shape index: {}]
  %s2 = inlined_call_operand.vmem [shape: f32[1,64], index: 2, kind: input, shape index: {}]
  %s3 = inlined_call_operand.vmem [shape: bf16[64,32], index: 3, kind: input, shape index: {}]
  %s4 = inlined_call_operand.vmem [shape: f32[1,32], index: 4, kind: input, shape index: {}]
  %s5 = inlined_call_operand.hbm [shape: f32[16,32], index: 5, kind: output, shape index: {}]
  %s6 = sld [smem:[#allocation0]]
  $region30: #{tpu_custom_call.1} parent=0
    _
  %s8 = ssub.s32 1, %s6
  %s9 = scalar_select 0, %s8, %s6
  $region1: #{tpu_custom_call.1} parent=0
    #allocation2 [shape = 'u8[8192]{0}', space=vmem, size = 0x2000, scoped, tag = 'output window, operand 0, single buffered']
    #allocation3 [shape = 's32[1]{0}', space=sflag, size = 0x4, scoped, tag = 'scoped memory for tpu_custom_call.1']
    %10 = vsyncpa [#allocation3], 0
    // Predicated region
    $region2: #{tpu_custom_call.1} parent=1 // pred_check
      _
    $region3: #{tpu_custom_call.1} parent=1 // pred_check_branch
      %12 = sbr.rel (0) target = $region5
    $region4: #{tpu_custom_call.1} parent=1 // pred_region
      _
    $region5: #{tpu_custom_call.1} parent=1 // pred_fallthru
      _
    // Predicated region
    $region6: #{tpu_custom_call.1} parent=1 // pred_check
      _
    $region7: #{tpu_custom_call.1} parent=1 // pred_check_branch
      %14 = sbr.rel (0) target = $region9
    $region8: #{tpu_custom_call.1} parent=1 // pred_region
      _
    $region9: #{tpu_custom_call.1} parent=1 // pred_fallthru
      _
    // Predicated region
    $region10: #{tpu_custom_call.1} parent=1 // pred_check
      _
    $region11: #{tpu_custom_call.1} parent=1 // pred_check_branch
      %16 = sbr.rel (0) target = $region13
    $region12: #{tpu_custom_call.1} parent=1 // pred_region
      _
    $region13: #{tpu_custom_call.1} parent=1 // pred_fallthru
      _
    // Predicated region
    $region14: #{tpu_custom_call.1} parent=1 // pred_check
      _
    $region15: #{tpu_custom_call.1} parent=1 // pred_check_branch
      %18 = sbr.rel (0) target = $region17
    $region16: #{tpu_custom_call.1} parent=1 // pred_region
      _
    $region17: #{tpu_custom_call.1} parent=1 // pred_fallthru
      _
    // Predicated region
    $region18: #{tpu_custom_call.1} parent=1 // pred_check
      _
    $region19: #{tpu_custom_call.1} parent=1 // pred_check_branch
      %20 = sbr.rel (0) target = $region21
    $region20: #{tpu_custom_call.1} parent=1 // pred_region
      _
    $region21: #{tpu_custom_call.1} parent=1 // pred_fallthru
      _
    %v22 = vld [vmem:[%s0] sm:$0xf]
    %v23 = vld [vmem:[%s0 + $0x4] sm:$0xf]
    %v24 = vld [vmem:[%s1] sm:$0xf]
    %v25 = vld [vmem:[%s1 + $0x4] sm:$0xf]
    %v26 = vld [vmem:[%s1 + $0x8] sm:$0xf]
    %v27 = vld [vmem:[%s1 + $0xc] sm:$0xf]
    %v28 = vld [vmem:[%s2] sm:$0x1]
    %v30 = vperm.slane %v28, 0
    %v34 = vunpack.c.l.b16 %v22
    %v35 = vunpack.c.l.b16 %v23
    %v36 = vpack.c.b16 %v35, %v34
    %v41 = vunpack.c.l.b16 %v24
    %v42 = vunpack.c.l.b16 %v25
    %v43 = vunpack.c.l.b16 %v26
    %v44 = vunpack.c.l.b16 %v27
    %v45 = vpack.c.b16 %v42, %v41
    %v46 = vpack.c.b16 %v44, %v43
    %vm49 = vcmask 261120
    %v51 = vsel %vm49, %v36, 0
    %53 = vmatpush.bf16.msra.mxu0 0
    %54 = vmatpush.bf16.msra.mxu0 0
    %55 = vmatpush.bf16.msra.mxu0 0
    %56 = vmatpush.bf16.msra.mxu0 0
    %57 = vmatpush.bf16.msra.mxu0 0
    %58 = vmatpush.bf16.msra.mxu0 0
    %59 = vmatpush.bf16.msra.mxu0 %v46
    %60 = vmatpush.bf16.msra.mxu0 %v45
    %61 = vmatmul.bf16.gmra.mxu0 %v51
    %v62 = vpop.f32.mrf.mxu0
    %v63 = vadd.f32 %v30, %v62
    %v64 = vpop.f32.mrf.mxu0
    %v65 = vadd.f32 %v30, %v64
    %66 = vdwg.mxu0
    %v67 = vmul.f32 %v63, %v63
    %v68 = vmul.f32 %v65, %v65
    %v69 = vmul.f32 %v63, %v67
    %v70 = vmul.f32 %v65, %v68
    %v71 = vmul.f32 %v69, 0.044715
    %v72 = vmul.f32 %v70, 0.044715
    %v73 = vadd.f32 %v63, %v71
    %v74 = vadd.f32 %v65, %v72
    %v75 = vmul.f32 %v73, 0.7978846
    %v76 = vmul.f32 %v74, 0.7978846
    %v77 = vtanh.pop %v75
    %v78 = vtanh.pop %v76
    %v79 = vadd.f32 %v77, 1.0
    %v80 = vadd.f32 %v78, 1.0
    %v81 = vmul.f32 %v79, 0.5
    %v82 = vmul.f32 %v80, 0.5
    %v83 = vmul.f32 %v63, %v81
    %v84 = vmul.f32 %v65, %v82
    %v85 = vpack.c.bf16 %v84, %v83
    %v86 = vld [vmem:[%s3] sm:$0xf]
    %v87 = vld [vmem:[%s3 + $0x4] sm:$0xf]
    %v88 = vld [vmem:[%s3 + $0x8] sm:$0xf]
    %v89 = vld [vmem:[%s3 + $0xc] sm:$0xf]
    %v90 = vld [vmem:[%s3 + $0x10] sm:$0xf]
    %v91 = vld [vmem:[%s3 + $0x14] sm:$0xf]
    %v92 = vld [vmem:[%s3 + $0x18] sm:$0xf]
    %v93 = vld [vmem:[%s3 + $0x1c] sm:$0xf]
    %v94 = vld [vmem:[%s4] sm:$0x1]
    %v96 = vperm.slane %v94, 0
    %v106 = vunpack.c.l.b16 %v86
    %v107 = vunpack.c.l.b16 %v87
    %v108 = vunpack.c.l.b16 %v88
    %v109 = vunpack.c.l.b16 %v89
    %v110 = vunpack.c.l.b16 %v90
    %v111 = vunpack.c.l.b16 %v91
    %v112 = vunpack.c.l.b16 %v92
    %v113 = vunpack.c.l.b16 %v93
    %v114 = vpack.c.b16 %v107, %v106
    %v115 = vpack.c.b16 %v109, %v108
    %v116 = vpack.c.b16 %v111, %v110
    %v117 = vpack.c.b16 %v113, %v112
    %vm122 = vcmask 523264
    %v124 = vsel %vm122, %v85, 0
    %126 = vmatpush.bf16.msra.mxu0 0
    %127 = vmatpush.bf16.msra.mxu0 0
    %128 = vmatpush.bf16.msra.mxu0 0
    %129 = vmatpush.bf16.msra.mxu0 0
    %130 = vmatpush.bf16.msra.mxu0 %v117
    %131 = vmatpush.bf16.msra.mxu0 %v116
    %132 = vmatpush.bf16.msra.mxu0 %v115
    %133 = vmatpush.bf16.msra.mxu0 %v114
    %134 = vmatmul.bf16.gmra.mxu0 %v124
    %v135 = vpop.f32.mrf.mxu0
    %v136 = vadd.f32 %v96, %v135
    %v137 = vpop.f32.mrf.mxu0
    %v138 = vadd.f32 %v96, %v137
    %139 = vdwg.mxu0
    %140 = vst.msk [vmem:[#allocation2] sm:$0xff] %vm49, %v136
    %141 = vst.msk [vmem:[#allocation2 + $0x8] sm:$0xff] %vm49, %v138
    // Predicated region
    $region22: #{tpu_custom_call.1} parent=1 // pred_check
      _
    $region23: #{tpu_custom_call.1} parent=1 // pred_check_branch
      %143 = sbr.rel (0) target = $region25
    $region24: #{tpu_custom_call.1} parent=1 // pred_region
      %145 = vsyncadd [#allocation3], 0
      %s146 = sshll.u32 [#allocation2], 4
      %s147 = int_to_ptr.vmem [resolvable:$true] %s146
      %s148 = sshll.u32 %s5, 4
      %s149 = int_to_ptr.hbm [resolvable:$true] %s148
      %154 = dma.vmem_to_hbm [thread:$0]  %s147, 256, %s149, [#allocation3], 128, 128, 8
    $region25: #{tpu_custom_call.1} parent=1 // pred_fallthru
      _
    // Predicated region
    $region26: #{tpu_custom_call.1} parent=1 // pred_check
      _
    $region27: #{tpu_custom_call.1} parent=1 // pred_check_branch
      %156 = sbr.rel (0) target = $region29
    $region28: #{tpu_custom_call.1} parent=1 // pred_region
      %158 = dma.done [#allocation3], 256
    $region29: #{tpu_custom_call.1} parent=1 // pred_fallthru
      _
    %159 = vsyncpa [#allocation3], 1

</llo_original>
